<compile_context>
chip_gen: v5e
topology: v5e:2x2
jax: 0.10.0
libtpu: 0.0.40
codegen_flags: <defaults>
</compile_context>

<pallas_src>
import functools
import math

import jax
import jax.numpy as jnp
from jax.experimental import pallas as pl
from jax.experimental.pallas import tpu as pltpu

_NEG_LOG_1E4 = -math.log(1e-4)   # = 9.210340371976182


def _vmem_capacity_bytes():
    """Physical per-core VMEM; conservative 64 MiB fallback (v7x-sized)."""
    try:
        info = pltpu.get_tpu_info()
        cap = getattr(info, "vmem_capacity_bytes", None)
        if cap:
            return int(cap)
    except Exception:
        pass
    return 64 * 1024 * 1024


def _sce_kernel(xt_ref, t_ref, out_ref, *, alpha, beta, n_total, block_n, ragged):
    i = pl.program_id(0)

    x = xt_ref[...].astype(jnp.float32)          # (C, BN)  classes x samples
    t = t_ref[...]                               # (1, BN)  int32 labels
    c, bn = x.shape

    # boolean target mask via sublane (class) iota compare — no f32 one-hot
    classes = jax.lax.broadcasted_iota(jnp.int32, (c, bn), 0)
    tmask = classes == t                                        # (C, BN) bool

    # numerically stable softmax pieces (reductions over the class/sublane axis)
    m = jnp.max(x, axis=0, keepdims=True)                       # (1, BN)
    ez = jnp.exp(x - m)                                         # (C, BN)
    se = jnp.sum(ez, axis=0, keepdims=True)                     # (1, BN)
    lse = jnp.log(se) + m                                       # (1, BN)

    # --- Cross entropy: lse - x[target] ---
    x_tgt = jnp.sum(jnp.where(tmask, x, 0.0), axis=0, keepdims=True)   # (1, BN)
    ce_rows = lse - x_tgt                                       # (1, BN)

    # --- Reverse cross entropy ---
    # log(clip(one_hot, 1e-4, 1)) == ln(1e-4) * (1 - one_hot), hence
    #   rce = -ln(1e-4) * (sum_j clamp(prob_j) - clamp(prob_target))
    inv_se = pl.reciprocal(se, approx=True)                     # (1, BN) EUP
    prob = jnp.maximum(ez * inv_se, 1e-7)                       # (C, BN)
    p_sum = jnp.sum(prob, axis=0, keepdims=True)                # (1, BN)
    # analytic prob[target]: reuses x_tgt, m, inv_se (no full-tile mask+reduce)
    p_tgt = jnp.maximum(jnp.exp(x_tgt - m) * inv_se, 1e-7)      # (1, BN)
    rce_rows = _NEG_LOG_1E4 * (p_sum - p_tgt)                   # (1, BN)

    loss_rows = alpha * ce_rows + beta * rce_rows               # (1, BN)

    if ragged:
        last = pl.num_programs(0) - 1

        @pl.when(i == last)
        def _():
            # mask out the padded samples in the final partial block; padded
            # columns may hold Inf/NaN intermediates — the select removes them
            col = jax.lax.broadcasted_iota(jnp.int32, (1, bn), 1) + i * block_n
            masked = jnp.where(col < n_total, loss_rows, 0.0)
            out_ref[...] = jnp.sum(masked, axis=(0, 1), keepdims=True)

        @pl.when(i != last)
        def _():
            out_ref[...] = jnp.sum(loss_rows, axis=(0, 1), keepdims=True)
    else:
        out_ref[...] = jnp.sum(loss_rows, axis=(0, 1), keepdims=True)


def sce_loss(x, target, *, alpha=0.1, beta=1.0, block_n=None, class_major=False):
    """Symmetric cross entropy (mean reduction).

    x:      (N, C) float logits (f32 or bf16).  If `class_major=True`, x is
            already (C, N) and the HBM transpose is skipped.
    target: (N,) integer labels.
    """
    if class_major:
        c, n = x.shape
        xt = x
    else:
        n, c = x.shape
        # lane-dense layout: classes on sublanes, samples on lanes.
        # Remaining HBM overhead; pass class_major=True to avoid it.
        xt = jnp.transpose(x)                       # (C, N)
    t2d = target.astype(jnp.int32).reshape(1, n)    # (1, N)

    itemsize = jnp.dtype(x.dtype).itemsize
    vmem_cap = _vmem_capacity_bytes()

    if block_n is None:
        # Honest per-sample VMEM estimate (all generations):
        #   2 double-buffered logits blocks (C padded to a sublane granule),
        #   2 double-buffered label rows (vreg-padded to 8 sublanes),
        #   ~10 full-tile f32/i32 temporaries, ~12 (1, BN) row temporaries.
        c_pad = max(8, ((c + 7) // 8) * 8)
        per_n = (2 * c_pad * itemsize) + (2 * 8 * 4) + (10 * c_pad * 4) + (12 * 8 * 4)
        bn = (int(0.7 * vmem_cap) // per_n // 128) * 128
        bn = max(128, bn)
        # keep at least two independent blocks when there is enough work so the
        # "parallel" grid axis can split across v7x's 2 TensorCores
        if n >= 256:
            half = ((-(-n // 2) + 127) // 128) * 128
            bn = min(bn, half)
        block_n = bn
    if block_n >= n:
        block_n = n                                 # full extent: always legal
    assert block_n == n or block_n % 128 == 0, (
        "block_n must be a multiple of 128 lanes (or the full batch)")

    num_blocks = pl.cdiv(n, block_n)
    ragged = (n % block_n) != 0

    kernel = functools.partial(
        _sce_kernel, alpha=float(alpha), beta=float(beta),
        n_total=n, block_n=block_n, ragged=ragged)

    # generous but generation-safe scoped-VMEM cap (<= 85% of physical VMEM)
    vmem_limit = max(32 * 1024 * 1024, int(0.85 * vmem_cap))

    partials = pl.pallas_call(
        kernel,
        out_shape=jax.ShapeDtypeStruct((num_blocks, 1), jnp.float32),
        grid_spec=pltpu.PrefetchScalarGridSpec(
            num_scalar_prefetch=0,
            grid=(num_blocks,),
            in_specs=[
                pl.BlockSpec((c, block_n), lambda i: (0, i)),
                pl.BlockSpec((1, block_n), lambda i: (0, i)),
            ],
            out_specs=pl.BlockSpec((1, 1), lambda i: (i, 0)),
        ),
        compiler_params=pltpu.CompilerParams(
            dimension_semantics=("parallel",),
            vmem_limit_bytes=int(vmem_limit)),
    )(xt, t2d)

    # tiny final combine / mean in the wrapper (keeps the grid axis parallel)
    return jnp.sum(partials) / jnp.float32(n)


def _sce_reference(x, target, alpha=0.1, beta=1.0):
    x = x.astype(jnp.float32)
    n, c = x.shape
    lse = jax.nn.logsumexp(x, axis=-1)
    x_t = jnp.take_along_axis(x, target[:, None], axis=-1)[:, 0]
    ce = jnp.mean(lse - x_t)
    prob = jnp.clip(jax.nn.softmax(x, axis=-1), 1e-7, 1.0)
    oh = jnp.clip(jax.nn.one_hot(target, c, dtype=jnp.float32), 1e-4, 1.0)
    rce = jnp.mean(-jnp.sum(prob * jnp.log(oh), axis=-1))
    return alpha * ce + beta * rce


if __name__ == "__main__":
    key = jax.random.PRNGKey(0)
    kx, kt = jax.random.split(key)

    RTOL = ATOL = 5e-3   # approx reciprocal on the softmax denominator

    # small shapes consistent with the module (num_classes=10)
    N, NUM_CLASSES = 8, 10
    x = jax.random.normal(kx, (N, NUM_CLASSES), dtype=jnp.float32) * 3.0
    target = jax.random.randint(kt, (N,), 0, NUM_CLASSES, dtype=jnp.int32)

    loss = sce_loss(x, target, alpha=0.1, beta=1.0)
    jax.block_until_ready(loss)
    ref = _sce_reference(x, target, alpha=0.1, beta=1.0)
    assert jnp.allclose(loss, ref, rtol=RTOL, atol=ATOL), (loss, ref)

    # tiled + masked path (N not a multiple of the block width)
    N2 = 300
    kx2, kt2 = jax.random.split(kt)
    x2 = jax.random.normal(kx2, (N2, NUM_CLASSES), dtype=jnp.float32) * 3.0
    target2 = jax.random.randint(kt2, (N2,), 0, NUM_CLASSES, dtype=jnp.int32)
    loss2 = sce_loss(x2, target2, alpha=0.1, beta=1.0, block_n=128)
    jax.block_until_ready(loss2)
    ref2 = _sce_reference(x2, target2, alpha=0.1, beta=1.0)
    assert jnp.allclose(loss2, ref2, rtol=RTOL, atol=ATOL), (loss2, ref2)

    # ragged last block with extreme logits (guards Inf/NaN in padded lanes)
    N3 = 200
    kx3, kt3 = jax.random.split(kt2)
    x3 = jax.random.normal(kx3, (N3, NUM_CLASSES), dtype=jnp.float32) * 50.0
    target3 = jax.random.randint(kt3, (N3,), 0, NUM_CLASSES, dtype=jnp.int32)
    loss3 = sce_loss(x3, target3, alpha=0.1, beta=1.0, block_n=128)
    jax.block_until_ready(loss3)
    ref3 = _sce_reference(x3, target3, alpha=0.1, beta=1.0)
    assert jnp.allclose(loss3, ref3, rtol=RTOL, atol=ATOL), (loss3, ref3)

    # bf16 logits are accepted (upcast inside the kernel)
    x2_bf16 = x2.astype(jnp.bfloat16)
    loss4 = sce_loss(x2_bf16, target2, alpha=0.1, beta=1.0, block_n=128)
    jax.block_until_ready(loss4)
    ref4 = _sce_reference(x2_bf16.astype(jnp.float32), target2, alpha=0.1, beta=1.0)
    assert jnp.allclose(loss4, ref4, rtol=RTOL, atol=ATOL), (loss4, ref4)

    print("KERNEL_OK")
</pallas_src>

<mosaic_0001>
module attributes {stable_mosaic.version = 11 : i64} {
  func.func @_sce_kernel(%arg0: i32, %arg1: memref<10x8xf32, #tpu.memory_space<vmem>>, %arg2: memref<1x8xi32, #tpu.memory_space<vmem>>, %arg3: memref<1x1xf32, #tpu.memory_space<vmem>>) attributes {dimension_semantics = [#tpu.dimension_semantics<parallel>], iteration_bounds = array<i64: 1>, scalar_prefetch = 0 : i64, scratch_operands = 0 : i64, tpu.core_type = #tpu.core_type<tc>, window_params = [{transform_indices = @transform_0, window_bounds = array<i64: 10, 8>}, {transform_indices = @transform_1, window_bounds = array<i64: 1, 8>}, {transform_indices = @transform_2, window_bounds = array<i64: 1, 1>}]} {
    %c0 = arith.constant 0 : index
    %c0_0 = arith.constant 0 : index
    %0 = vector.load %arg1[%c0, %c0_0] : memref<10x8xf32, #tpu.memory_space<vmem>>, vector<10x8xf32>
    %c0_1 = arith.constant 0 : index
    %c0_2 = arith.constant 0 : index
    %1 = vector.load %arg2[%c0_1, %c0_2] : memref<1x8xi32, #tpu.memory_space<vmem>>, vector<1x8xi32>
    %2 = tpu.iota {dimensions = array<i32: 0>} : vector<10x8xi32>
    %3 = vector.broadcast %1 : vector<1x8xi32> to vector<10x8xi32>
    %4 = arith.cmpi eq, %2, %3 : vector<10x8xi32>
    %cst = arith.constant dense<0xFF800000> : vector<8xf32>
    %5 = vector.multi_reduction <maximumf>, %0, %cst [0] : vector<10x8xf32> to vector<8xf32>
    %6 = vector.shape_cast %5 : vector<8xf32> to vector<1x8xf32>
    %7 = vector.broadcast %6 : vector<1x8xf32> to vector<10x8xf32>
    %8 = arith.subf %0, %7 : vector<10x8xf32>
    %9 = math.exp %8 : vector<10x8xf32>
    %cst_3 = arith.constant dense<0.000000e+00> : vector<8xf32>
    %10 = vector.multi_reduction <add>, %9, %cst_3 [0] : vector<10x8xf32> to vector<8xf32>
    %11 = vector.shape_cast %10 : vector<8xf32> to vector<1x8xf32>
    %12 = math.log %11 : vector<1x8xf32>
    %13 = arith.addf %12, %6 : vector<1x8xf32>
    %cst_4 = arith.constant 0.000000e+00 : f32
    %14 = vector.broadcast %cst_4 : f32 to vector<10x8xf32>
    %15 = arith.select %4, %0, %14 : vector<10x8xi1>, vector<10x8xf32>
    %cst_5 = arith.constant dense<0.000000e+00> : vector<8xf32>
    %16 = vector.multi_reduction <add>, %15, %cst_5 [0] : vector<10x8xf32> to vector<8xf32>
    %17 = vector.shape_cast %16 : vector<8xf32> to vector<1x8xf32>
    %18 = arith.subf %13, %17 : vector<1x8xf32>
    %19 = tpu.reciprocal %11 {approx = true} : vector<1x8xf32> -> vector<1x8xf32>
    %20 = vector.broadcast %19 : vector<1x8xf32> to vector<10x8xf32>
    %21 = arith.mulf %9, %20 : vector<10x8xf32>
    %cst_6 = arith.constant 1.000000e-07 : f32
    %22 = vector.broadcast %cst_6 : f32 to vector<10x8xf32>
    %23 = arith.maximumf %21, %22 : vector<10x8xf32>
    %cst_7 = arith.constant dense<0.000000e+00> : vector<8xf32>
    %24 = vector.multi_reduction <add>, %23, %cst_7 [0] : vector<10x8xf32> to vector<8xf32>
    %25 = vector.shape_cast %24 : vector<8xf32> to vector<1x8xf32>
    %26 = arith.subf %17, %6 : vector<1x8xf32>
    %27 = math.exp %26 : vector<1x8xf32>
    %28 = arith.mulf %27, %19 : vector<1x8xf32>
    %cst_8 = arith.constant 1.000000e-07 : f32
    %29 = vector.broadcast %cst_8 : f32 to vector<1x8xf32>
    %30 = arith.maximumf %28, %29 : vector<1x8xf32>
    %31 = arith.subf %25, %30 : vector<1x8xf32>
    %cst_9 = arith.constant 9.21034049 : f32
    %32 = vector.broadcast %cst_9 : f32 to vector<1x8xf32>
    %33 = arith.mulf %32, %31 : vector<1x8xf32>
    %cst_10 = arith.constant 1.000000e-01 : f32
    %34 = vector.broadcast %cst_10 : f32 to vector<1x8xf32>
    %35 = arith.mulf %34, %18 : vector<1x8xf32>
    %cst_11 = arith.constant 1.000000e+00 : f32
    %36 = vector.broadcast %cst_11 : f32 to vector<1x8xf32>
    %37 = arith.mulf %36, %33 : vector<1x8xf32>
    %38 = arith.addf %35, %37 : vector<1x8xf32>
    %39 = vector.shape_cast %38 : vector<1x8xf32> to vector<1x1x8xf32>
    %cst_12 = arith.constant dense<0.000000e+00> : vector<1xf32>
    %40 = vector.multi_reduction <add>, %39, %cst_12 [1, 2] : vector<1x1x8xf32> to vector<1xf32>
    %41 = vector.shape_cast %40 : vector<1xf32> to vector<1x1x1xf32>
    %42 = vector.extract %41[0, 0, 0] : f32 from vector<1x1x1xf32>
    %43 = vector.broadcast %42 : f32 to vector<1x1xf32>
    %c0_13 = arith.constant 0 : index
    %c0_14 = arith.constant 0 : index
    %44 = vector.load %arg3[%c0_13, %c0_14] : memref<1x1xf32, #tpu.memory_space<vmem>>, vector<1x1xf32>
    tpu.vector_store %arg3[%c0_13, %c0_14], %43 {strides = array<i32>} : memref<1x1xf32, #tpu.memory_space<vmem>>, vector<1x1xf32>,
    return
  }
  func.func @transform_0(%arg0: i32) -> (i32, i32) {
    %c0_i32 = arith.constant 0 : i32
    %c0_i32_0 = arith.constant 0 : i32
    return %c0_i32, %arg0 : i32, i32
  }
  func.func @transform_1(%arg0: i32) -> (i32, i32) {
    %c0_i32 = arith.constant 0 : i32
    %c0_i32_0 = arith.constant 0 : i32
    return %c0_i32, %arg0 : i32, i32
  }
  func.func @transform_2(%arg0: i32) -> (i32, i32) {
    %c0_i32 = arith.constant 0 : i32
    %c0_i32_0 = arith.constant 0 : i32
    return %arg0, %c0_i32 : i32, i32
  }
}

</mosaic_0001>

<llo_original>
// kernel: tpu_custom_call.1
$region0: #{tpu_custom_call.1}
  #allocation0 [shape = 'u32[]', space=smem, size = 0x4, offset = 0x4, fixed_abs, tag = 'smem constant byte address 0x4 - core index']
  #allocation1 [shape = 'u32[72,128]{1,0:T(1,128)}', space=vmem, size = 0x9000, scoped, tag = 'internal scratch']
  %s0 = inlined_call_operand.vmem [shape: f32[10,8], index: 0, kind: input, shape index: {}]
  %s1 = inlined_call_operand.vmem [shape: s32[1,8], index: 1, kind: input, shape index: {}]
  %s2 = inlined_call_operand.hbm [shape: f32[1,1], index: 2, kind: output, shape index: {}]
  %s3 = sld [smem:[#allocation0]]
  $region18: #{tpu_custom_call.1} parent=0
    _
  %s5 = ssub.s32 1, %s3
  %s6 = scalar_select 0, %s5, %s3
  $region1: #{tpu_custom_call.1} parent=0
    #allocation2 [shape = 'u8[512]{0}', space=vmem, size = 0x400, scoped, tag = 'output window, operand 0, single buffered']
    #allocation3 [shape = 's32[1]{0}', space=sflag, size = 0x4, scoped, tag = 'scoped memory for tpu_custom_call.1']
    %7 = vsyncpa [#allocation3], 0
    // Predicated region
    $region2: #{tpu_custom_call.1} parent=1 // pred_check
      _
    $region3: #{tpu_custom_call.1} parent=1 // pred_check_branch
      %9 = sbr.rel (0) target = $region5
    $region4: #{tpu_custom_call.1} parent=1 // pred_region
      _
    $region5: #{tpu_custom_call.1} parent=1 // pred_fallthru
      _
    // Predicated region
    $region6: #{tpu_custom_call.1} parent=1 // pred_check
      _
    $region7: #{tpu_custom_call.1} parent=1 // pred_check_branch
      %11 = sbr.rel (0) target = $region9
    $region8: #{tpu_custom_call.1} parent=1 // pred_region
      _
    $region9: #{tpu_custom_call.1} parent=1 // pred_fallthru
      _
    %v12 = vld [vmem:[%s0] sm:$0xff]
    %v13 = vld [vmem:[%s0 + $0x8] sm:$0x3]
    %v14 = vld [vmem:[%s1] sm:$0x1]
    %v15 = vlaneseq
    %v16 = vshrl.u32 %v15, 7
    %v17 = vadd.s32 %v16, 8
    %v18 = vperm.slane %v14, 0
    %vm19 = vcmp.eq.s32.totalorder %v16, %v18
    %vm20 = vcmp.eq.s32.totalorder %v17, %v18
    %vm21 = vcmask 64512
    %v22 = vsel %vm21, %v12, -inf
    %vm23 = vcmask 58368
    %v24 = vsel %vm23, %v13, -inf
    %v25 = vmax.f32 %v22, %v24
    %v26 = vrot.slane %v25, 4
    %v27 = vmax.f32 %v25, %v26
    %v28 = vrot.slane %v27, 2
    %v29 = vmax.f32 %v27, %v28
    %v30 = vrot.slane %v29, 1
    %v31 = vmax.f32 %v29, %v30
    %v32 = vsub.f32 %v12, %v31
    %v33 = vsub.f32 %v13, %v31
    %v34 = vmul.f32 %v32, 1.442695
    %v35 = vpow.pop %v34
    %v36 = vmul.f32 %v33, 1.442695
    %v37 = vpow.pop %v36
    %v38 = vsel %vm21, %v35, 0.0
    %v39 = vsel %vm23, %v37, 0.0
    %v40 = vadd.f32 %v38, %v39
    %v41 = vrot.slane %v40, 4
    %v42 = vadd.f32 %v40, %v41
    %v43 = vrot.slane %v42, 2
    %v44 = vadd.f32 %v42, %v43
    %v45 = vrot.slane %v44, 1
    %v46 = vadd.f32 %v44, %v45
    %v47 = vlog2.pop %v46
    %v48 = vmul.f32 %v47, 0.6931472
    %v49 = vadd.f32 %v48, %v31
    %v50 = vsel %vm19, %v12, 0.0
    %v51 = vsel %vm20, %v13, 0.0
    %v52 = vsel %vm21, %v50, 0.0
    %v53 = vsel %vm23, %v51, 0.0
    %v54 = vadd.f32 %v52, %v53
    %v55 = vrot.slane %v54, 4
    %v56 = vadd.f32 %v54, %v55
    %v57 = vrot.slane %v56, 2
    %v58 = vadd.f32 %v56, %v57
    %v59 = vrot.slane %v58, 1
    %v60 = vadd.f32 %v58, %v59
    %v61 = vsub.f32 %v49, %v60
    %v62 = vrcp.pop %v46
    %v63 = vmul.f32 %v35, %v62
    %v64 = vmul.f32 %v37, %v62
    %v65 = vmax.f32 %v63, 1e-07
    %v66 = vmax.f32 %v64, 1e-07
    %v67 = vsel %vm21, %v65, 0.0
    %v68 = vsel %vm23, %v66, 0.0
    %v69 = vadd.f32 %v67, %v68
    %v70 = vrot.slane %v69, 4
    %v71 = vadd.f32 %v69, %v70
    %v72 = vrot.slane %v71, 2
    %v73 = vadd.f32 %v71, %v72
    %v74 = vrot.slane %v73, 1
    %v75 = vadd.f32 %v73, %v74
    %v76 = vsub.f32 %v60, %v31
    %v77 = vmul.f32 %v76, 1.442695
    %v78 = vpow.pop %v77
    %v79 = vmul.f32 %v78, %v62
    %v80 = vmax.f32 %v79, 1e-07
    %v81 = vsub.f32 %v75, %v80
    %v82 = vmul.f32 %v81, 9.2103405
    %v83 = vmul.f32 %v61, 0.1
    %v84 = vadd.f32 %v83, %v82
    %vm85 = vcmask 57344
    %v86 = vsel %vm85, %v84, 0.0
    %87 = vadd.xlane.f32.xlu0 %v86
    %v88 = vpop.xlane.xlu0 %87
    %v89 = vrot.slane %v88, 4
    %v90 = vadd.f32 %v88, %v89
    %v91 = vrot.slane %v90, 2
    %v92 = vadd.f32 %v90, %v91
    %v93 = vrot.slane %v92, 1
    %v94 = vadd.f32 %v92, %v93
    %s95 = vtos %v94
    %v96 = vstv %s95
    %vm97 = vcmask 0
    %98 = vst.msk [vmem:[#allocation2] sm:$0x1] %vm97, %v96
    // Predicated region
    $region10: #{tpu_custom_call.1} parent=1 // pred_check
      _
    $region11: #{tpu_custom_call.1} parent=1 // pred_check_branch
      %100 = sbr.rel (0) target = $region13
    $region12: #{tpu_custom_call.1} parent=1 // pred_region
      %102 = vsyncadd [#allocation3], 0
      %s104 = sshll.u32 [#allocation2], 4
      %s105 = int_to_ptr.vmem [resolvable:$true] %s104
      %s106 = sshll.u32 %s2, 4
      %s107 = int_to_ptr.hbm [resolvable:$true] %s106
      %109 = dma.vmem_to_hbm [thread:$0]  %s105, 16, %s107, [#allocation3]
    $region13: #{tpu_custom_call.1} parent=1 // pred_fallthru
      _
    // Predicated region
    $region14: #{tpu_custom_call.1} parent=1 // pred_check
      _
    $region15: #{tpu_custom_call.1} parent=1 // pred_check_branch
      %111 = sbr.rel (0) target = $region17
    $region16: #{tpu_custom_call.1} parent=1 // pred_region
      %113 = dma.done [#allocation3], 16
    $region17: #{tpu_custom_call.1} parent=1 // pred_fallthru
      _
    %114 = vsyncpa [#allocation3], 1

</llo_original>
